<compile_context>
chip_gen: v5e
topology: v5e:2x2
jax: 0.10.0
libtpu: 0.0.40
codegen_flags: <defaults>
</compile_context>

<pallas_src>
import jax
import jax.numpy as jnp
from jax.experimental import pallas as pl
from jax.experimental.pallas import tpu as pltpu

_LANES = 128                  # lane width of the output slab (dense vst)
_MIN_PALLAS_ELEMS = 1 << 14   # below this, a fused XLA dot beats pallas_call overhead


def _round_up(n: int, m: int) -> int:
    return (n + m - 1) // m * m


def _linear_kernel(x_ref, wt_ref, b_ref, o_ref, acc_ref):
    # grid = (batch tiles, K tiles); K (reduction) is the last / innermost axis.
    k = pl.program_id(1)

    @pl.when(k == 0)
    def _():
        acc_ref[...] = jnp.zeros_like(acc_ref)

    # Cast inside VMEM (mirrors torch `x.to(weight.dtype)`) so HBM traffic for x
    # stays in its native (possibly narrow, e.g. bf16) dtype.
    x = x_ref[...].astype(wt_ref.dtype)
    acc_ref[...] += jnp.dot(x, wt_ref[...], preferred_element_type=jnp.float32)

    @pl.when(k == pl.num_programs(1) - 1)
    def _():
        o_ref[...] = (acc_ref[...] + b_ref[0, 0]).astype(o_ref.dtype)


def linear_classifier_forward(x, weight, bias, *, tb: int = 1024, td: int = 2048):
    """x: (B, D); weight: (1, D); bias: (1,) -> (B, 1) in weight.dtype."""
    B, D = x.shape
    out_dtype = weight.dtype

    # Tiny problems: per-grid-step (~0.35 us) + launch overhead dominates; let XLA fuse.
    if B * D < _MIN_PALLAS_ELEMS:
        return x.astype(out_dtype) @ weight.T + bias

    # Tile sizes: multiples of (8, 128), clamped to the (padded) problem size.
    # Defaults (1024, 2048) keep the double-buffered x tile <= 16 MiB f32 / 8 MiB bf16,
    # comfortably inside v7x's 64 MiB VMEM while staying near the HBM roofline.
    tb = max(8, _round_up(min(tb, _round_up(B, 8)), 8))
    td = max(_LANES, _round_up(min(td, _round_up(D, _LANES)), _LANES))
    b_pad = _round_up(B, tb)
    d_pad = _round_up(D, td)

    # Zero-pad so remainder K tiles contribute nothing to the reduction and the
    # extra batch rows are simply sliced off afterwards.
    if (b_pad, d_pad) != (B, D):
        x = jnp.pad(x, ((0, b_pad - B), (0, d_pad - D)))

    # Weight as a lane-dense (d_pad, 128) slab with the real column in lane 0.
    wt = jnp.zeros((d_pad, _LANES), dtype=out_dtype).at[:D, 0].set(weight[0])
    b_smem = bias.reshape(1, 1).astype(jnp.float32)

    grid = (b_pad // tb, d_pad // td)

    # VMEM budget: double-buffered x / wt / out tiles + f32 accumulator, with headroom.
    x_bytes = jnp.dtype(x.dtype).itemsize
    w_bytes = jnp.dtype(out_dtype).itemsize
    vmem_est = (2 * tb * td * x_bytes
                + 2 * td * _LANES * w_bytes
                + 2 * tb * _LANES * w_bytes
                + tb * _LANES * 4)
    vmem_limit = min(int(1.5 * vmem_est) + (2 << 20), 56 * 1024 * 1024)

    out_padded = pl.pallas_call(
        _linear_kernel,
        out_shape=jax.ShapeDtypeStruct((b_pad, _LANES), out_dtype),
        grid_spec=pltpu.PrefetchScalarGridSpec(
            num_scalar_prefetch=0,
            grid=grid,
            in_specs=[
                pl.BlockSpec((tb, td), lambda i, k: (i, k)),       # x tile
                pl.BlockSpec((td, _LANES), lambda i, k: (k, 0)),   # weight slab (k only)
                pl.BlockSpec(memory_space=pltpu.SMEM),             # bias scalar
            ],
            out_specs=pl.BlockSpec((tb, _LANES), lambda i, k: (i, 0)),
            scratch_shapes=[pltpu.VMEM((tb, _LANES), jnp.float32)],
        ),
        compiler_params=pltpu.CompilerParams(
            dimension_semantics=("parallel", "arbitrary"),
            vmem_limit_bytes=vmem_limit,
        ),
    )(x, wt, b_smem)

    return out_padded[:B, :1]


if __name__ == "__main__":
    key = jax.random.PRNGKey(0)
    k_x, k_w, k_b, k_x2 = jax.random.split(key, 4)

    # Case 1: aligned f32 input, multi-tile grid (4 batch tiles x 2 K tiles).
    batch, input_dim = 512, 256
    bound = 1.0 / (input_dim ** 0.5)
    weight = jax.random.uniform(k_w, (1, input_dim), jnp.float32, -bound, bound)
    bias = jax.random.uniform(k_b, (1,), jnp.float32, -bound, bound)
    x = jax.random.normal(k_x, (batch, input_dim), jnp.float32)

    out = linear_classifier_forward(x, weight, bias, tb=128, td=128)
    out = jax.block_until_ready(out)
    ref = x @ weight.T + bias
    assert out.shape == (batch, 1)
    assert jnp.allclose(out, ref, atol=2e-4, rtol=2e-4)

    # Case 2: unaligned shapes + bf16 input (cast to weight dtype happens in-kernel).
    batch2, input_dim2 = 200, 300
    bound2 = 1.0 / (input_dim2 ** 0.5)
    weight2 = jax.random.uniform(k_w, (1, input_dim2), jnp.float32, -bound2, bound2)
    bias2 = jax.random.uniform(k_b, (1,), jnp.float32, -bound2, bound2)
    x2 = jax.random.normal(k_x2, (batch2, input_dim2), jnp.float32).astype(jnp.bfloat16)

    out2 = linear_classifier_forward(x2, weight2, bias2, tb=64, td=128)
    out2 = jax.block_until_ready(out2)
    ref2 = x2.astype(jnp.float32) @ weight2.T + bias2
    assert out2.shape == (batch2, 1)
    assert jnp.allclose(out2, ref2, atol=2e-4, rtol=2e-4)

    print("KERNEL_OK")
</pallas_src>

<mosaic_0001>
module attributes {stable_mosaic.version = 11 : i64} {
  func.func @_linear_kernel(%arg0: i32, %arg1: i32, %arg2: memref<128x128xf32, #tpu.memory_space<vmem>>, %arg3: memref<128x128xf32, #tpu.memory_space<vmem>>, %arg4: memref<1x1xf32, #tpu.memory_space<smem>>, %arg5: memref<128x128xf32, #tpu.memory_space<vmem>>, %arg6: memref<128x128xf32, #tpu.memory_space<vmem>>) attributes {dimension_semantics = [#tpu.dimension_semantics<parallel>, #tpu.dimension_semantics<arbitrary>], iteration_bounds = array<i64: 4, 2>, scalar_prefetch = 0 : i64, scratch_operands = 1 : i64, tpu.core_type = #tpu.core_type<tc>, window_params = [{transform_indices = @transform_0, window_bounds = array<i64: 128, 128>}, {transform_indices = @transform_1, window_bounds = array<i64: 128, 128>}, {transform_indices = @transform_2, window_bounds = array<i64: 1, 1>}, {transform_indices = @transform_3, window_bounds = array<i64: 128, 128>}]} {
    %c0_i32 = arith.constant 0 : i32
    %0 = arith.cmpi eq, %arg1, %c0_i32 : i32
    %1 = arith.extui %0 : i1 to i32
    %c0_i32_0 = arith.constant 0 : i32
    %2 = arith.cmpi ne, %1, %c0_i32_0 : i32
    scf.if %2 {
      %cst_9 = arith.constant 0.000000e+00 : f32
      %12 = vector.broadcast %cst_9 : f32 to vector<128x128xf32>
      %c0_10 = arith.constant 0 : index
      %c0_11 = arith.constant 0 : index
      %13 = vector.load %arg6[%c0_10, %c0_11] : memref<128x128xf32, #tpu.memory_space<vmem>>, vector<128x128xf32>
      tpu.vector_store %arg6[%c0_10, %c0_11], %12 {strides = array<i32>} : memref<128x128xf32, #tpu.memory_space<vmem>>, vector<128x128xf32>,
    } else {
    }
    %c0 = arith.constant 0 : index
    %c0_1 = arith.constant 0 : index
    %3 = vector.load %arg2[%c0, %c0_1] : memref<128x128xf32, #tpu.memory_space<vmem>>, vector<128x128xf32>
    %c0_2 = arith.constant 0 : index
    %c0_3 = arith.constant 0 : index
    %4 = vector.load %arg6[%c0_2, %c0_3] : memref<128x128xf32, #tpu.memory_space<vmem>>, vector<128x128xf32>
    %c0_4 = arith.constant 0 : index
    %c0_5 = arith.constant 0 : index
    %5 = vector.load %arg3[%c0_4, %c0_5] : memref<128x128xf32, #tpu.memory_space<vmem>>, vector<128x128xf32>
    %cst = arith.constant dense<0.000000e+00> : vector<128x128xf32>
    %6 = tpu.matmul %3, %5, %cst {dimension_numbers = #tpu.dot_dimension_numbers<[1], [0], [0], [1], [0, 0, 1, 1], [], []>} : vector<128x128xf32>, vector<128x128xf32>, vector<128x128xf32> -> vector<128x128xf32>
    %7 = arith.addf %4, %6 : vector<128x128xf32>
    %c0_6 = arith.constant 0 : index
    %c0_7 = arith.constant 0 : index
    %8 = vector.load %arg6[%c0_6, %c0_7] : memref<128x128xf32, #tpu.memory_space<vmem>>, vector<128x128xf32>
    tpu.vector_store %arg6[%c0_6, %c0_7], %7 {strides = array<i32>} : memref<128x128xf32, #tpu.memory_space<vmem>>, vector<128x128xf32>,
    %c1_i32 = arith.constant 1 : i32
    %9 = arith.cmpi eq, %arg1, %c1_i32 : i32
    %10 = arith.extui %9 : i1 to i32
    %c0_i32_8 = arith.constant 0 : i32
    %11 = arith.cmpi ne, %10, %c0_i32_8 : i32
    scf.if %11 {
      %c0_9 = arith.constant 0 : index
      %c0_10 = arith.constant 0 : index
      %12 = vector.load %arg6[%c0_9, %c0_10] : memref<128x128xf32, #tpu.memory_space<vmem>>, vector<128x128xf32>
      %c0_11 = arith.constant 0 : index
      %c0_12 = arith.constant 0 : index
      %13 = memref.load %arg4[%c0_11, %c0_12] : memref<1x1xf32, #tpu.memory_space<smem>>
      %14 = vector.broadcast %13 : f32 to vector<128x128xf32>
      %15 = arith.addf %12, %14 : vector<128x128xf32>
      %c0_13 = arith.constant 0 : index
      %c0_14 = arith.constant 0 : index
      %16 = vector.load %arg5[%c0_13, %c0_14] : memref<128x128xf32, #tpu.memory_space<vmem>>, vector<128x128xf32>
      tpu.vector_store %arg5[%c0_13, %c0_14], %15 {strides = array<i32>} : memref<128x128xf32, #tpu.memory_space<vmem>>, vector<128x128xf32>,
    } else {
    }
    return
  }
  func.func @transform_0(%arg0: i32, %arg1: i32) -> (i32, i32) {
    %c0_i32 = arith.constant 0 : i32
    return %arg0, %arg1 : i32, i32
  }
  func.func @transform_1(%arg0: i32, %arg1: i32) -> (i32, i32) {
    %c0_i32 = arith.constant 0 : i32
    %c0_i32_0 = arith.constant 0 : i32
    return %arg1, %c0_i32 : i32, i32
  }
  func.func @transform_2(%arg0: i32, %arg1: i32) -> (i32, i32) {
    %c0_i32 = arith.constant 0 : i32
    %c0_i32_0 = arith.constant 0 : i32
    %c0_i32_1 = arith.constant 0 : i32
    return %c0_i32, %c0_i32_0 : i32, i32
  }
  func.func @transform_3(%arg0: i32, %arg1: i32) -> (i32, i32) {
    %c0_i32 = arith.constant 0 : i32
    %c0_i32_0 = arith.constant 0 : i32
    return %arg0, %c0_i32 : i32, i32
  }
}

</mosaic_0001>

<llo_original>
// kernel: tpu_custom_call.1
$region0: #{tpu_custom_call.1}
  #allocation0 [shape = 'u32[]', space=smem, size = 0x4, offset = 0x4, fixed_abs, tag = 'smem constant byte address 0x4 - core index']
  #allocation1 [shape = 'u32[72,128]{1,0:T(1,128)}', space=vmem, size = 0x9000, scoped, tag = 'internal scratch']
  #allocation2 [shape = 'f32[128,128]{1,0:T(8,128)}', space=vmem, size = 0x10000, scoped, tag = 'scratch operand']
  #allocation3 [shape = 'f32[1,1]{1,0:T(1,128)S(6)}', space=smem, size = 0x200, scoped, tag = 'scoped memory for tpu_custom_call.1']
  %s0 = inlined_call_operand.hbm [shape: f32[512,256], index: 0, kind: input, shape index: {}]
  %s1 = inlined_call_operand.hbm [shape: f32[256,128], index: 1, kind: input, shape index: {}]
  %s2 = inlined_call_operand.<no memory space> [shape: f32[1,1], index: 2, kind: input, shape index: {}]
  %s3 = inlined_call_operand.hbm [shape: f32[512,128], index: 3, kind: output, shape index: {}]
  %s4 = sld [smem:[#allocation0]]
  $region61: #{tpu_custom_call.1} parent=0
    _
  %s6 = ssub.s32 1, %s4
  %s7 = scalar_select 0, %s6, %s4
  %8 = sst [smem:[#allocation3]] %s2
  $region1: #{tpu_custom_call.1} parent=0
    #allocation4 [shape = 'u8[131072]{0}', space=vmem, size = 0x20000, scoped, tag = 'input window, operand 0']
    #allocation5 [shape = 's32[2]{0}', space=sflag, size = 0x8, scoped, tag = 'scoped memory for tpu_custom_call.1']
    #allocation6 [shape = 's32[2]{0}', space=sflag, size = 0x8, scoped, tag = 'scoped memory for tpu_custom_call.1']
    #allocation7 [shape = 'u8[131072]{0}', space=vmem, size = 0x20000, scoped, tag = 'input window, operand 1']
    #allocation8 [shape = 's32[2]{0}', space=sflag, size = 0x8, scoped, tag = 'scoped memory for tpu_custom_call.1']
    #allocation9 [shape = 'u8[131072]{0}', space=vmem, size = 0x20000, scoped, tag = 'output window, operand 0']
    %9 = vsyncpa [#allocation5], 0
    %s10 = scalar_lea.sflag [#allocation5], 1
    %11 = vsyncpa %s10, 0
    %12 = vsyncpa [#allocation8], 0
    %s13 = scalar_lea.sflag [#allocation8], 1
    %14 = vsyncpa %s13, 0
    %15 = vsyncpa [#allocation6], 0
    %s16 = scalar_lea.sflag [#allocation6], 1
    %17 = vsyncpa %s16, 0
    loop: start=0, step=1, limit=10
    $region2: #{tpu_custom_call.1} parent=1 // loop_pre_header
      _
    $region3: #{tpu_custom_call.1} parent=1 // loop_header
      %s19 = sphi 0, %s23
      %p20 = scmp.ge.s32.totalorder %s19, 10
      %s26 = sphi 0, %s38
      %s27 = sphi 0, %s34
      %s28 = sphi 0, %s26
      %s29 = sphi 0, %s27
      %s30 = sphi 0, %s28
      %s31 = sphi 0, %s29
      %s43 = sphi 0, %s45
      %s46 = sphi 0, %s43
      %s47 = sphi 0, %s46
      %s63 = sphi 0, %s47
      %s69 = sphi 0, %s71
      %s72 = sphi 0, %s69
      %s73 = sphi 0, %s72
      %s89 = sphi 0, %s73
      %s93 = sphi 0, %s93
      %s95 = sphi 0, %s93
      %s96 = sphi 0, %s95
      %s110 = sphi 0, %s96
      %s116 = sphi 0, %s118
      %s119 = sphi 0, %s116
      %s120 = sphi 0, %s119
      %s136 = sphi 0, %s120
    $region4: #{tpu_custom_call.1} parent=1 // loop_header_branch
      %22 = sbr.rel (%p20) target = $region8
    $region5: #{tpu_custom_call.1} parent=1 // loop_body
      %s24 = ssub.s32 %s19, 1
      %s25 = ssub.s32 %s19, 2
      %s32 = sadd.s32 1, %s27
      %p33 = scmp.ge.s32.totalorder %s32, 2
      %s34 = scalar_select %p33, 0, %s32
      %s35 = sadd.s32 1, %s26
      %s36 = scalar_select %p33, %s35, %s26
      %p37 = scmp.ge.s32.totalorder %s36, 4
      %s38 = scalar_select %p37, 0, %s36
      %s39 = ssub.s32 %s26, %s38
      %s40 = ssub.s32 %s27, %s34
      %s41 = sor.u32 %s39, %s40
      %p42 = scmp.eq.s32.totalorder %s41, 0
      %s44 = sadd.s32 %s43, 1
      %s45 = scalar_select %p42, %s43, %s44
      %p48 = pneg %p42
      %p49 = scmp.eq.s32.totalorder %s19, 7
      %p50 = por %p48, %p49
      %p51 = scmp.ne.s32.totalorder %s43, %s46
      %p52 = scmp.eq.s32.totalorder %s19, 0
      %p53 = por %p51, %p52
      %p54 = scmp.ne.s32.totalorder %s43, %s46
      %p55 = scmp.eq.s32.totalorder %s24, 7
      %p56 = por %p54, %p55
      %p57 = scmp.ne.s32.totalorder %s46, %s47
      %p58 = scmp.eq.s32.totalorder %s24, 0
      %p59 = por %p57, %p58
      %p60 = scmp.ne.s32.totalorder %s46, %s47
      %p61 = scmp.eq.s32.totalorder %s25, 7
      %p62 = por %p60, %p61
      %p64 = scmp.ne.s32.totalorder %s47, %s63
      %p65 = scmp.eq.s32.totalorder %s25, 0
      %p66 = por %p64, %p65
      %s67 = ssub.s32 %s27, %s34
      %p68 = scmp.eq.s32.totalorder %s67, 0
      %s70 = sadd.s32 %s69, 1
      %s71 = scalar_select %p68, %s69, %s70
      %p74 = pneg %p68
      %p75 = scmp.eq.s32.totalorder %s19, 7
      %p76 = por %p74, %p75
      %p77 = scmp.ne.s32.totalorder %s69, %s72
      %p78 = scmp.eq.s32.totalorder %s19, 0
      %p79 = por %p77, %p78
      %p80 = scmp.ne.s32.totalorder %s69, %s72
      %p81 = scmp.eq.s32.totalorder %s24, 7
      %p82 = por %p80, %p81
      %p83 = scmp.ne.s32.totalorder %s72, %s73
      %p84 = scmp.eq.s32.totalorder %s24, 0
      %p85 = por %p83, %p84
      %p86 = scmp.ne.s32.totalorder %s72, %s73
      %p87 = scmp.eq.s32.totalorder %s25, 7
      %p88 = por %p86, %p87
      %p90 = scmp.ne.s32.totalorder %s73, %s89
      %p91 = scmp.eq.s32.totalorder %s25, 0
      %p92 = por %p90, %p91
      %s94 = sadd.s32 %s93, 1
      %p97 = scmp.eq.s32.totalorder %s19, 7
      %p98 = scmp.ne.s32.totalorder %s93, %s95
      %p99 = scmp.eq.s32.totalorder %s19, 0
      %p100 = por %p98, %p99
      %p101 = scmp.ne.s32.totalorder %s93, %s95
      %p102 = scmp.eq.s32.totalorder %s24, 7
      %p103 = por %p101, %p102
      %p104 = scmp.ne.s32.totalorder %s95, %s96
      %p105 = scmp.eq.s32.totalorder %s24, 0
      %p106 = por %p104, %p105
      %p107 = scmp.ne.s32.totalorder %s95, %s96
      %p108 = scmp.eq.s32.totalorder %s25, 7
      %p109 = por %p107, %p108
      %p111 = scmp.ne.s32.totalorder %s96, %s110
      %p112 = scmp.eq.s32.totalorder %s25, 0
      %p113 = por %p111, %p112
      %s114 = ssub.s32 %s26, %s38
      %p115 = scmp.eq.s32.totalorder %s114, 0
      %s117 = sadd.s32 %s116, 1
      %s118 = scalar_select %p115, %s116, %s117
      %p121 = pneg %p115
      %p122 = scmp.eq.s32.totalorder %s19, 7
      %p123 = por %p121, %p122
      %p124 = scmp.ne.s32.totalorder %s116, %s119
      %p125 = scmp.eq.s32.totalorder %s19, 0
      %p126 = por %p124, %p125
      %p127 = scmp.ne.s32.totalorder %s116, %s119
      %p128 = scmp.eq.s32.totalorder %s24, 7
      %p129 = por %p127, %p128
      %p130 = scmp.ne.s32.totalorder %s119, %s120
      %p131 = scmp.eq.s32.totalorder %s24, 0
      %p132 = por %p130, %p131
      %p133 = scmp.ne.s32.totalorder %s119, %s120
      %p134 = scmp.eq.s32.totalorder %s25, 7
      %p135 = por %p133, %p134
      %p137 = scmp.ne.s32.totalorder %s120, %s136
      %p138 = scmp.eq.s32.totalorder %s25, 0
      %p139 = por %p137, %p138
      %p140 = scmp.le.s32.totalorder 1, %s19
      %p141 = scmp.lt.s32.totalorder %s19, 9
      %p142 = pnand %p140, %p141
      %p143 = pneg %p142
      // Predicated region
      $region9: #{tpu_custom_call.1} parent=5 // pred_check
        _
      $region10: #{tpu_custom_call.1} parent=5 // pred_check_branch
        %145 = sbr.rel (%p142) target = $region12
      $region11: #{tpu_custom_call.1} parent=5 // pred_region
        %s146 = ssub.s32 %s19, 1
        // Predicated region
        $region13: #{tpu_custom_call.1} parent=11 // pred_check
          %p147 = pneg %p106
        $region14: #{tpu_custom_call.1} parent=11 // pred_check_branch
          %149 = sbr.rel (%p147) target = $region16
        $region15: #{tpu_custom_call.1} parent=11 // pred_region
          _
        $region16: #{tpu_custom_call.1} parent=11 // pred_fallthru
          _
      $region12: #{tpu_custom_call.1} parent=5 // pred_fallthru
        _
      %p150 = scmp.lt.s32.totalorder %s19, 8
      // Predicated region
      $region17: #{tpu_custom_call.1} parent=5 // pred_check
        %p151 = pneg %p150
      $region18: #{tpu_custom_call.1} parent=5 // pred_check_branch
        %153 = sbr.rel (%p151) target = $region20
      $region19: #{tpu_custom_call.1} parent=5 // pred_region
        // Predicated region
        $region21: #{tpu_custom_call.1} parent=19 // pred_check
          %p154 = pneg %p53
        $region22: #{tpu_custom_call.1} parent=19 // pred_check_branch
          %156 = sbr.rel (%p154) target = $region24
        $region23: #{tpu_custom_call.1} parent=19 // pred_region
          %s157 = sand.u32 %s43, 1
          %s158 = scalar_lea.sflag [#allocation5], %s157
          %s159 = sand.u32 %s43, 1
          %s160 = smul.addr %s159, 128
          %s161 = scalar_lea.vmem [#allocation4], %s160
          %s162 = smul.u32 16, %s26
          %164 = vsyncadd %s158, 0
          %s165 = smul.addr %s162, 2
          %s166 = sadd.s32 %s27, %s165
          %s167 = smul.addr %s166, 8
          %s168 = scalar_lea.hbm %s0, %s167
          %s169 = sshll.u32 %s168, 4
          %s170 = int_to_ptr.hbm [resolvable:$true] %s169
          %s171 = sshll.u32 %s161, 4
          %s172 = int_to_ptr.vmem [resolvable:$true] %s171
          %177 = dma.hbm_to_vmem [thread:$0]  %s170, 2048, %s172, %s158, 256, 128, 8
        $region24: #{tpu_custom_call.1} parent=19 // pred_fallthru
          _
        // Predicated region
        $region25: #{tpu_custom_call.1} parent=19 // pred_check
          %p178 = pneg %p79
        $region26: #{tpu_custom_call.1} parent=19 // pred_check_branch
          %180 = sbr.rel (%p178) target = $region28
        $region27: #{tpu_custom_call.1} parent=19 // pred_region
          %s181 = sand.u32 %s69, 1
          %s182 = scalar_lea.sflag [#allocation8], %s181
          %s183 = sand.u32 %s69, 1
          %s184 = smul.addr %s183, 128
          %s185 = scalar_lea.vmem [#allocation7], %s184
          %s186 = smul.u32 16, %s27
          %188 = vsyncadd %s182, 0
          %s189 = smul.addr %s186, 8
          %s190 = scalar_lea.hbm %s1, %s189
          %s191 = sshll.u32 %s190, 4
          %s192 = int_to_ptr.hbm [resolvable:$true] %s191
          %s193 = sshll.u32 %s185, 4
          %s194 = int_to_ptr.vmem [resolvable:$true] %s193
          %199 = dma.hbm_to_vmem [thread:$0]  %s192, 2048, %s194, %s182, 128, 128, 8
        $region28: #{tpu_custom_call.1} parent=19 // pred_fallthru
          _
      $region20: #{tpu_custom_call.1} parent=5 // pred_fallthru
        _
      %p200 = scmp.le.s32.totalorder 1, %s19
      %p201 = scmp.lt.s32.totalorder %s19, 9
      %p202 = pnand %p200, %p201
      %p203 = pneg %p202
      // Predicated region
      $region29: #{tpu_custom_call.1} parent=5 // pred_check
        _
      $region30: #{tpu_custom_call.1} parent=5 // pred_check_branch
        %205 = sbr.rel (%p202) target = $region32
      $region31: #{tpu_custom_call.1} parent=5 // pred_region
        %s206 = ssub.s32 %s19, 1
        %s207 = sand.u32 %s46, 1
        %s208 = scalar_lea.sflag [#allocation5], %s207
        %s209 = sand.u32 %s46, 1
        %s210 = smul.addr %s209, 128
        %s211 = scalar_lea.vmem [#allocation4], %s210
        // Predicated region
        $region33: #{tpu_custom_call.1} parent=31 // pred_check
          %p212 = pneg %p59
        $region34: #{tpu_custom_call.1} parent=31 // pred_check_branch
          %214 = sbr.rel (%p212) target = $region36
        $region35: #{tpu_custom_call.1} parent=31 // pred_region
          %216 = dma.done %s208, 2048
        $region36: #{tpu_custom_call.1} parent=31 // pred_fallthru
          _
        %s217 = sand.u32 %s72, 1
        %s218 = scalar_lea.sflag [#allocation8], %s217
        %s219 = sand.u32 %s72, 1
        %s220 = smul.addr %s219, 128
        %s221 = scalar_lea.vmem [#allocation7], %s220
        // Predicated region
        $region37: #{tpu_custom_call.1} parent=31 // pred_check
          %p222 = pneg %p85
        $region38: #{tpu_custom_call.1} parent=31 // pred_check_branch
          %224 = sbr.rel (%p222) target = $region40
        $region39: #{tpu_custom_call.1} parent=31 // pred_region
          %226 = dma.done %s218, 2048
        $region40: #{tpu_custom_call.1} parent=31 // pred_fallthru
          _
        %s227 = sand.u32 %s46, 1
        %s228 = scalar_lea.sflag [#allocation5], %s227
        %s229 = sand.u32 %s46, 1
        %s230 = smul.addr %s229, 128
        %s231 = scalar_lea.vmem [#allocation4], %s230
        %p232 = pneg %p59
        %p233 = pneg %p56
        %s234 = sand.u32 %s72, 1
        %s235 = scalar_lea.sflag [#allocation8], %s234
        %s236 = sand.u32 %s72, 1
        %s237 = smul.addr %s236, 128
        %s238 = scalar_lea.vmem [#allocation7], %s237
        %p239 = pneg %p85
        %p240 = pneg %p82
        %p241 = pneg %p106
        %p242 = pneg %p103
        %p243 = pneg %p132
        %p244 = pneg %p129
        %s245 = sand.u32 %s119, 1
        %s246 = scalar_lea.sflag [#allocation6], %s245
        %s247 = sand.u32 %s119, 1
        %s248 = smul.addr %s247, 128
        %s249 = scalar_lea.vmem [#allocation9], %s248
        %s250 = smul.u32 16, %s28
        %s251 = smul.u32 16, %s29
        %s252 = smul.u32 16, %s28
        %p253 = scmp.eq.s32.totalorder %s29, 0
        // Predicated region
        $region41: #{tpu_custom_call.1} parent=31 // pred_check
          %p254 = pneg %p253
        $region42: #{tpu_custom_call.1} parent=31 // pred_check_branch
          %256 = sbr.rel (%p254) target = $region44
        $region43: #{tpu_custom_call.1} parent=31 // pred_region
          %257 = vst [vmem:[#allocation2] sm:$0xff] 0.0
          %258 = vst [vmem:[#allocation2 + $0x8] sm:$0xff] 0.0
          %259 = vst [vmem:[#allocation2 + $0x10] sm:$0xff] 0.0
          %260 = vst [vmem:[#allocation2 + $0x18] sm:$0xff] 0.0
          %261 = vst [vmem:[#allocation2 + $0x20] sm:$0xff] 0.0
          %262 = vst [vmem:[#allocation2 + $0x28] sm:$0xff] 0.0
          %263 = vst [vmem:[#allocation2 + $0x30] sm:$0xff] 0.0
          %264 = vst [vmem:[#allocation2 + $0x38] sm:$0xff] 0.0
          %265 = vst [vmem:[#allocation2 + $0x40] sm:$0xff] 0.0
          %266 = vst [vmem:[#allocation2 + $0x48] sm:$0xff] 0.0
          %267 = vst [vmem:[#allocation2 + $0x50] sm:$0xff] 0.0
          %268 = vst [vmem:[#allocation2 + $0x58] sm:$0xff] 0.0
          %269 = vst [vmem:[#allocation2 + $0x60] sm:$0xff] 0.0
          %270 = vst [vmem:[#allocation2 + $0x68] sm:$0xff] 0.0
          %271 = vst [vmem:[#allocation2 + $0x70] sm:$0xff] 0.0
          %272 = vst [vmem:[#allocation2 + $0x78] sm:$0xff] 0.0
        $region44: #{tpu_custom_call.1} parent=31 // pred_fallthru
          _
        %v273 = vld [vmem:[%s211] sm:$0xff]
        %v274 = vld [vmem:[%s211 + $0x8] sm:$0xff]
        %v275 = vld [vmem:[%s211 + $0x10] sm:$0xff]
        %v276 = vld [vmem:[%s211 + $0x18] sm:$0xff]
        %v277 = vld [vmem:[%s211 + $0x20] sm:$0xff]
        %v278 = vld [vmem:[%s211 + $0x28] sm:$0xff]
        %v279 = vld [vmem:[%s211 + $0x30] sm:$0xff]
        %v280 = vld [vmem:[%s211 + $0x38] sm:$0xff]
        %v281 = vld [vmem:[%s211 + $0x40] sm:$0xff]
        %v282 = vld [vmem:[%s211 + $0x48] sm:$0xff]
        %v283 = vld [vmem:[%s211 + $0x50] sm:$0xff]
        %v284 = vld [vmem:[%s211 + $0x58] sm:$0xff]
        %v285 = vld [vmem:[%s211 + $0x60] sm:$0xff]
        %v286 = vld [vmem:[%s211 + $0x68] sm:$0xff]
        %v287 = vld [vmem:[%s211 + $0x70] sm:$0xff]
        %v288 = vld [vmem:[%s211 + $0x78] sm:$0xff]
        %v289 = vld [vmem:[#allocation2] sm:$0xff]
        %v290 = vld [vmem:[#allocation2 + $0x8] sm:$0xff]
        %v291 = vld [vmem:[#allocation2 + $0x10] sm:$0xff]
        %v292 = vld [vmem:[#allocation2 + $0x18] sm:$0xff]
        %v293 = vld [vmem:[#allocation2 + $0x20] sm:$0xff]
        %v294 = vld [vmem:[#allocation2 + $0x28] sm:$0xff]
        %v295 = vld [vmem:[#allocation2 + $0x30] sm:$0xff]
        %v296 = vld [vmem:[#allocation2 + $0x38] sm:$0xff]
        %v297 = vld [vmem:[#allocation2 + $0x40] sm:$0xff]
        %v298 = vld [vmem:[#allocation2 + $0x48] sm:$0xff]
        %v299 = vld [vmem:[#allocation2 + $0x50] sm:$0xff]
        %v300 = vld [vmem:[#allocation2 + $0x58] sm:$0xff]
        %v301 = vld [vmem:[#allocation2 + $0x60] sm:$0xff]
        %v302 = vld [vmem:[#allocation2 + $0x68] sm:$0xff]
        %v303 = vld [vmem:[#allocation2 + $0x70] sm:$0xff]
        %v304 = vld [vmem:[#allocation2 + $0x78] sm:$0xff]
        %v305 = vld [vmem:[%s221] sm:$0xff]
        %v306 = vld [vmem:[%s221 + $0x8] sm:$0xff]
        %v307 = vld [vmem:[%s221 + $0x10] sm:$0xff]
        %v308 = vld [vmem:[%s221 + $0x18] sm:$0xff]
        %v309 = vld [vmem:[%s221 + $0x20] sm:$0xff]
        %v310 = vld [vmem:[%s221 + $0x28] sm:$0xff]
        %v311 = vld [vmem:[%s221 + $0x30] sm:$0xff]
        %v312 = vld [vmem:[%s221 + $0x38] sm:$0xff]
        %v313 = vld [vmem:[%s221 + $0x40] sm:$0xff]
        %v314 = vld [vmem:[%s221 + $0x48] sm:$0xff]
        %v315 = vld [vmem:[%s221 + $0x50] sm:$0xff]
        %v316 = vld [vmem:[%s221 + $0x58] sm:$0xff]
        %v317 = vld [vmem:[%s221 + $0x60] sm:$0xff]
        %v318 = vld [vmem:[%s221 + $0x68] sm:$0xff]
        %v319 = vld [vmem:[%s221 + $0x70] sm:$0xff]
        %v320 = vld [vmem:[%s221 + $0x78] sm:$0xff]
        %321 = vmatpush.msra.mxu0 %v320
        %322 = vmatpush.msra.mxu0 %v319
        %323 = vmatpush.msra.mxu0 %v318
        %324 = vmatpush.msra.mxu0 %v317
        %325 = vmatpush.msra.mxu0 %v316
        %326 = vmatpush.msra.mxu0 %v315
        %327 = vmatpush.msra.mxu0 %v314
        %328 = vmatpush.msra.mxu0 %v313
        %329 = vmatpush.msra.mxu0 %v312
        %330 = vmatpush.msra.mxu0 %v311
        %331 = vmatpush.msra.mxu0 %v310
        %332 = vmatpush.msra.mxu0 %v309
        %333 = vmatpush.msra.mxu0 %v308
        %334 = vmatpush.msra.mxu0 %v307
        %335 = vmatpush.msra.mxu0 %v306
        %336 = vmatpush.msra.mxu0 %v305
        %337 = vmatmul.f32.gmra.mxu0 %v273
        %v338 = vpop.f32.mrf.mxu0
        %v339 = vadd.f32 0.0, %v338
        %340 = vmatmul.f32.gmra.mxu0 %v274
        %v341 = vpop.f32.mrf.mxu0
        %v342 = vadd.f32 0.0, %v341
        %343 = vmatmul.f32.gmra.mxu0 %v275
        %v344 = vpop.f32.mrf.mxu0
        %v345 = vadd.f32 0.0, %v344
        %346 = vmatmul.f32.gmra.mxu0 %v276
        %v347 = vpop.f32.mrf.mxu0
        %v348 = vadd.f32 0.0, %v347
        %349 = vmatmul.f32.gmra.mxu0 %v277
        %v350 = vpop.f32.mrf.mxu0
        %v351 = vadd.f32 0.0, %v350
        %352 = vmatmul.f32.gmra.mxu0 %v278
        %v353 = vpop.f32.mrf.mxu0
        %v354 = vadd.f32 0.0, %v353
        %355 = vmatmul.f32.gmra.mxu0 %v279
        %v356 = vpop.f32.mrf.mxu0
        %v357 = vadd.f32 0.0, %v356
        %358 = vmatmul.f32.gmra.mxu0 %v280
        %v359 = vpop.f32.mrf.mxu0
        %v360 = vadd.f32 0.0, %v359
        %361 = vmatmul.f32.gmra.mxu0 %v281
        %v362 = vpop.f32.mrf.mxu0
        %v363 = vadd.f32 0.0, %v362
        %364 = vmatmul.f32.gmra.mxu0 %v282
        %v365 = vpop.f32.mrf.mxu0
        %v366 = vadd.f32 0.0, %v365
        %367 = vmatmul.f32.gmra.mxu0 %v283
        %v368 = vpop.f32.mrf.mxu0
        %v369 = vadd.f32 0.0, %v368
        %370 = vmatmul.f32.gmra.mxu0 %v284
        %v371 = vpop.f32.mrf.mxu0
        %v372 = vadd.f32 0.0, %v371
        %373 = vmatmul.f32.gmra.mxu0 %v285
        %v374 = vpop.f32.mrf.mxu0
        %v375 = vadd.f32 0.0, %v374
        %376 = vmatmul.f32.gmra.mxu0 %v286
        %v377 = vpop.f32.mrf.mxu0
        %v378 = vadd.f32 0.0, %v377
        %379 = vmatmul.f32.gmra.mxu0 %v287
        %v380 = vpop.f32.mrf.mxu0
        %v381 = vadd.f32 0.0, %v380
        %382 = vmatmul.f32.gmra.mxu0 %v288
        %v383 = vpop.f32.mrf.mxu0
        %v384 = vadd.f32 0.0, %v383
        %385 = vdwg.mxu0
        %v386 = vadd.f32 %v289, %v339
        %v387 = vadd.f32 %v290, %v342
        %v388 = vadd.f32 %v291, %v345
        %v389 = vadd.f32 %v292, %v348
        %v390 = vadd.f32 %v293, %v351
        %v391 = vadd.f32 %v294, %v354
        %v392 = vadd.f32 %v295, %v357
        %v393 = vadd.f32 %v296, %v360
        %v394 = vadd.f32 %v297, %v363
        %v395 = vadd.f32 %v298, %v366
        %v396 = vadd.f32 %v299, %v369
        %v397 = vadd.f32 %v300, %v372
        %v398 = vadd.f32 %v301, %v375
        %v399 = vadd.f32 %v302, %v378
        %v400 = vadd.f32 %v303, %v381
        %v401 = vadd.f32 %v304, %v384
        %402 = vst [vmem:[#allocation2] sm:$0xff] %v386
        %403 = vst [vmem:[#allocation2 + $0x8] sm:$0xff] %v387
        %404 = vst [vmem:[#allocation2 + $0x10] sm:$0xff] %v388
        %405 = vst [vmem:[#allocation2 + $0x18] sm:$0xff] %v389
        %406 = vst [vmem:[#allocation2 + $0x20] sm:$0xff] %v390
        %407 = vst [vmem:[#allocation2 + $0x28] sm:$0xff] %v391
        %408 = vst [vmem:[#allocation2 + $0x30] sm:$0xff] %v392
        %409 = vst [vmem:[#allocation2 + $0x38] sm:$0xff] %v393
        %410 = vst [vmem:[#allocation2 + $0x40] sm:$0xff] %v394
        %411 = vst [vmem:[#allocation2 + $0x48] sm:$0xff] %v395
        %412 = vst [vmem:[#allocation2 + $0x50] sm:$0xff] %v396
        %413 = vst [vmem:[#allocation2 + $0x58] sm:$0xff] %v397
        %414 = vst [vmem:[#allocation2 + $0x60] sm:$0xff] %v398
        %415 = vst [vmem:[#allocation2 + $0x68] sm:$0xff] %v399
        %416 = vst [vmem:[#allocation2 + $0x70] sm:$0xff] %v400
        %417 = vst [vmem:[#allocation2 + $0x78] sm:$0xff] %v401
        %p418 = scmp.eq.s32.totalorder %s29, 1
        // Predicated region
        $region45: #{tpu_custom_call.1} parent=31 // pred_check
          %p419 = pneg %p418
        $region46: #{tpu_custom_call.1} parent=31 // pred_check_branch
          %421 = sbr.rel (%p419) target = $region48
        $region47: #{tpu_custom_call.1} parent=31 // pred_region
          %v422 = vld [vmem:[#allocation2] sm:$0xff]
          %v423 = vld [vmem:[#allocation2 + $0x8] sm:$0xff]
          %v424 = vld [vmem:[#allocation2 + $0x10] sm:$0xff]
          %v425 = vld [vmem:[#allocation2 + $0x18] sm:$0xff]
          %v426 = vld [vmem:[#allocation2 + $0x20] sm:$0xff]
          %v427 = vld [vmem:[#allocation2 + $0x28] sm:$0xff]
          %v428 = vld [vmem:[#allocation2 + $0x30] sm:$0xff]
          %v429 = vld [vmem:[#allocation2 + $0x38] sm:$0xff]
          %v430 = vld [vmem:[#allocation2 + $0x40] sm:$0xff]
          %v431 = vld [vmem:[#allocation2 + $0x48] sm:$0xff]
          %v432 = vld [vmem:[#allocation2 + $0x50] sm:$0xff]
          %v433 = vld [vmem:[#allocation2 + $0x58] sm:$0xff]
          %v434 = vld [vmem:[#allocation2 + $0x60] sm:$0xff]
          %v435 = vld [vmem:[#allocation2 + $0x68] sm:$0xff]
          %v436 = vld [vmem:[#allocation2 + $0x70] sm:$0xff]
          %v437 = vld [vmem:[#allocation2 + $0x78] sm:$0xff]
          %s438 = sld [smem:[#allocation3]]
          %v439 = vstv %s438
          %v440 = vadd.f32 %v422, %v439
          %v441 = vadd.f32 %v423, %v439
          %v442 = vadd.f32 %v424, %v439
          %v443 = vadd.f32 %v425, %v439
          %v444 = vadd.f32 %v426, %v439
          %v445 = vadd.f32 %v427, %v439
          %v446 = vadd.f32 %v428, %v439
          %v447 = vadd.f32 %v429, %v439
          %v448 = vadd.f32 %v430, %v439
          %v449 = vadd.f32 %v431, %v439
          %v450 = vadd.f32 %v432, %v439
          %v451 = vadd.f32 %v433, %v439
          %v452 = vadd.f32 %v434, %v439
          %v453 = vadd.f32 %v435, %v439
          %v454 = vadd.f32 %v436, %v439
          %v455 = vadd.f32 %v437, %v439
          %456 = vst [vmem:[%s249] sm:$0xff] %v440
          %457 = vst [vmem:[%s249 + $0x8] sm:$0xff] %v441
          %458 = vst [vmem:[%s249 + $0x10] sm:$0xff] %v442
          %459 = vst [vmem:[%s249 + $0x18] sm:$0xff] %v443
          %460 = vst [vmem:[%s249 + $0x20] sm:$0xff] %v444
          %461 = vst [vmem:[%s249 + $0x28] sm:$0xff] %v445
          %462 = vst [vmem:[%s249 + $0x30] sm:$0xff] %v446
          %463 = vst [vmem:[%s249 + $0x38] sm:$0xff] %v447
          %464 = vst [vmem:[%s249 + $0x40] sm:$0xff] %v448
          %465 = vst [vmem:[%s249 + $0x48] sm:$0xff] %v449
          %466 = vst [vmem:[%s249 + $0x50] sm:$0xff] %v450
          %467 = vst [vmem:[%s249 + $0x58] sm:$0xff] %v451
          %468 = vst [vmem:[%s249 + $0x60] sm:$0xff] %v452
          %469 = vst [vmem:[%s249 + $0x68] sm:$0xff] %v453
          %470 = vst [vmem:[%s249 + $0x70] sm:$0xff] %v454
          %471 = vst [vmem:[%s249 + $0x78] sm:$0xff] %v455
        $region48: #{tpu_custom_call.1} parent=31 // pred_fallthru
          _
        %s472 = sand.u32 %s119, 1
        %s473 = scalar_lea.sflag [#allocation6], %s472
        %s474 = sand.u32 %s119, 1
        %s475 = smul.addr %s474, 128
        %s476 = scalar_lea.vmem [#allocation9], %s475
        // Predicated region
        $region49: #{tpu_custom_call.1} parent=31 // pred_check
          %p477 = pneg %p129
        $region50: #{tpu_custom_call.1} parent=31 // pred_check_branch
          %479 = sbr.rel (%p477) target = $region52
        $region51: #{tpu_custom_call.1} parent=31 // pred_region
          %s480 = smul.u32 16, %s28
          %482 = vsyncadd %s473, 0
          %s483 = smul.addr %s480, 8
          %s484 = scalar_lea.hbm %s3, %s483
          %s485 = sshll.u32 %s476, 4
          %s486 = int_to_ptr.vmem [resolvable:$true] %s485
          %s487 = sshll.u32 %s484, 4
          %s488 = int_to_ptr.hbm [resolvable:$true] %s487
          %493 = dma.vmem_to_hbm [thread:$0]  %s486, 2048, %s488, %s473, 128, 128, 8
        $region52: #{tpu_custom_call.1} parent=31 // pred_fallthru
          _
      $region32: #{tpu_custom_call.1} parent=5 // pred_fallthru
        _
      %p494 = scmp.le.s32.totalorder 2, %s19
      // Predicated region
      $region53: #{tpu_custom_call.1} parent=5 // pred_check
        %p495 = pneg %p494
      $region54: #{tpu_custom_call.1} parent=5 // pred_check_branch
        %497 = sbr.rel (%p495) target = $region56
      $region55: #{tpu_custom_call.1} parent=5 // pred_region
        %s498 = ssub.s32 %s19, 2
        // Predicated region
        $region57: #{tpu_custom_call.1} parent=55 // pred_check
          %p499 = pneg %p135
        $region58: #{tpu_custom_call.1} parent=55 // pred_check_branch
          %501 = sbr.rel (%p499) target = $region60
        $region59: #{tpu_custom_call.1} parent=55 // pred_region
          %s502 = sand.u32 %s120, 1
          %s503 = scalar_lea.sflag [#allocation6], %s502
          %s504 = sand.u32 %s120, 1
          %s505 = smul.addr %s504, 128
          %s506 = scalar_lea.vmem [#allocation9], %s505
          %508 = dma.done %s503, 2048
        $region60: #{tpu_custom_call.1} parent=55 // pred_fallthru
          _
      $region56: #{tpu_custom_call.1} parent=5 // pred_fallthru
        _
    $region6: #{tpu_custom_call.1} parent=1 // loop_footer
      %s23 = sadd.s32 1, %s19
    $region7: #{tpu_custom_call.1} parent=1 // loop_footer_branch
      %18 = sbr.rel target = $region3
    $region8: #{tpu_custom_call.1} parent=1 // loop_exit
      _
    %509 = vsyncpa [#allocation5], 1
    %s510 = scalar_lea.sflag [#allocation5], 1
    %511 = vsyncpa %s510, 1
    %512 = vsyncpa [#allocation8], 1
    %s513 = scalar_lea.sflag [#allocation8], 1
    %514 = vsyncpa %s513, 1
    %515 = vsyncpa [#allocation6], 1
    %s516 = scalar_lea.sflag [#allocation6], 1
    %517 = vsyncpa %s516, 1

</llo_original>
